<compile_context>
chip_gen: v5e
topology: v5e:2x2
jax: 0.10.0
libtpu: 0.0.40
codegen_flags: <defaults>
</compile_context>

<pallas_src>
import jax
import jax.numpy as jnp
from jax.experimental import pallas as pl
from jax.experimental.pallas import tpu as pltpu


def _noise_kernel(x_ref, z_ref, a_ref, o_ref):
    # x_ref: VMEM (n_b, t_c, t_hw)   input tile
    # z_ref: VMEM (n_b, 1,   t_hw)   gaussian map tile (shared across channels)
    # a_ref: VMEM (1,   t_c, 1)      per-channel std (x dtype)
    # o_ref: VMEM (n_b, t_c, t_hw)   output tile
    o_ref[...] = (x_ref[...] + z_ref[...] * a_ref[...]).astype(o_ref.dtype)


def _round_down(v, m):
    return (v // m) * m


def _pick_tiles(N, C, hw, elem_bytes, target_bytes=2 << 20, max_bytes=4 << 20):
    """Pick (n_b, t_c, t_hw) block dims targeting ~2 MiB per x block, capped at 4 MiB."""
    # Spatial tile (lane axis): multiple of 128, or the full hw extent.
    if C * hw * elem_bytes <= max_bytes or hw <= 128:
        t_hw = hw
    else:
        t_hw = _round_down(max(target_bytes // (C * elem_bytes), 128), 128)
        t_hw = max(128, min(t_hw, hw))
    # Channel tile (sublane axis): multiple of 8, or the full C extent.
    # Guards against large-C / tiny-hw layers whose whole (C, hw) slab would not fit VMEM.
    if C * t_hw * elem_bytes <= max_bytes:
        t_c = C
    else:
        t_c = _round_down(max(max_bytes // (t_hw * elem_bytes), 8), 8)
        t_c = max(8, min(t_c, C))
    # Batch several samples into one block when the per-sample block is small,
    # so tiny feature maps do not degenerate into N steps of pure pipeline overhead.
    n_b = 1
    if t_c == C and t_hw == hw:
        n_b = max(1, min(N, target_bytes // max(1, C * hw * elem_bytes)))
    # Keep at least 2 grid steps when possible so v7x can use both TensorCores.
    steps = (-(-N // n_b)) * (-(-C // t_c)) * (-(-hw // t_hw))
    if steps == 1:
        if N > 1:
            n_b = -(-N // 2)
        elif t_hw > 256:
            t_hw = max(128, _round_down(t_hw // 2, 128))
    return int(n_b), int(t_c), int(t_hw)


def noise_forward(x, a, seed):
    """x: (N, C, H, W) float; a: (ch, 1, 1) with ch == C or ch == 1 (PyTorch param shape)."""
    N, C, H, W = x.shape
    hw = H * W
    x3 = x.reshape(N, C, hw)
    elem = jnp.dtype(x.dtype).itemsize

    a_vec = jnp.asarray(a).reshape(-1)
    if a_vec.shape[0] == 1:
        a_vec = jnp.broadcast_to(a_vec, (C,))
    assert a_vec.shape[0] == C
    a3 = a_vec.reshape(1, C, 1).astype(x.dtype)

    # One gaussian map per sample, shared across channels (matches randn(N,1,H,W)),
    # generated in x.dtype to halve its HBM traffic for bf16 inputs.
    # NOTE: same `seed` reproduces the same z; callers should vary it per forward pass.
    z = jax.random.normal(jax.random.PRNGKey(seed), (N, 1, hw), dtype=x.dtype)

    n_b, t_c, t_hw = _pick_tiles(N, C, hw, elem)
    grid = (pl.cdiv(N, n_b), pl.cdiv(C, t_c), pl.cdiv(hw, t_hw))

    # Size the scoped VMEM to the actual double-buffered footprint (+ headroom).
    block_x = n_b * t_c * t_hw * elem
    block_z = n_b * 1 * t_hw * elem
    block_a = 1 * t_c * 1 * elem
    vmem_limit = 2 * (2 * block_x + block_z + block_a) + (4 << 20)
    vmem_limit = int(min(max(vmem_limit, 16 << 20), 48 << 20))

    out3 = pl.pallas_call(
        _noise_kernel,
        out_shape=jax.ShapeDtypeStruct((N, C, hw), x.dtype),
        grid_spec=pl.GridSpec(
            grid=grid,
            in_specs=[
                pl.BlockSpec((n_b, t_c, t_hw), lambda n, c, j: (n, c, j)),  # x
                pl.BlockSpec((n_b, 1, t_hw), lambda n, c, j: (n, 0, j)),    # z (shared over C)
                pl.BlockSpec((1, t_c, 1), lambda n, c, j: (0, c, 0)),       # a
            ],
            out_specs=pl.BlockSpec((n_b, t_c, t_hw), lambda n, c, j: (n, c, j)),
        ),
        compiler_params=pltpu.CompilerParams(
            dimension_semantics=("parallel", "parallel", "parallel"),
            vmem_limit_bytes=vmem_limit),
    )(x3, z, a3)
    return out3.reshape(N, C, H, W)


if __name__ == "__main__":
    key = jax.random.PRNGKey(0)
    N, C, H, W = 2, 4, 16, 16
    x = jax.random.normal(key, (N, C, H, W), dtype=jnp.float32)

    # Parameter as in Noise.__init__: a = ones(ch, 1, 1) * init_val.
    # Use a nonzero init_val so the noise path is exercised (default init_val=0 is identity).
    init_val = 0.5
    a = jnp.ones((C, 1, 1), jnp.float32) * init_val

    out = noise_forward(x, a, seed=42)
    jax.block_until_ready(out)
    assert out.shape == x.shape and out.dtype == x.dtype

    # 1) a == 0  =>  output == x  (identity path)
    out_zero = noise_forward(x, jnp.zeros((C, 1, 1), jnp.float32), seed=42)
    assert jnp.allclose(out_zero, x, atol=1e-6), "a=0 should be identity"

    # 2) the noise map is shared across channels (randn(N,1,H,W) semantics)
    z_per_c = (out - x) / init_val
    assert jnp.allclose(z_per_c, z_per_c[:, 0:1, :, :], atol=1e-5), \
        "noise must be shared over channels"

    # 3) noise is roughly standard normal
    assert abs(float(jnp.mean(z_per_c[:, 0]))) < 0.3
    assert 0.6 < float(jnp.std(z_per_c[:, 0])) < 1.4

    # 4) global (ch == 1) parameter path also works
    out_g = noise_forward(x, jnp.ones((1, 1, 1), jnp.float32) * init_val, seed=7)
    jax.block_until_ready(out_g)
    assert out_g.shape == x.shape

    print("KERNEL_OK")
</pallas_src>

<mosaic_0001>
module attributes {stable_mosaic.version = 11 : i64} {
  func.func @_noise_kernel(%arg0: i32, %arg1: i32, %arg2: i32, %arg3: memref<1x4x256xf32, #tpu.memory_space<vmem>>, %arg4: memref<1x1x256xf32, #tpu.memory_space<vmem>>, %arg5: memref<1x4x1xf32, #tpu.memory_space<vmem>>, %arg6: memref<1x4x256xf32, #tpu.memory_space<vmem>>) attributes {dimension_semantics = [#tpu.dimension_semantics<parallel>, #tpu.dimension_semantics<parallel>, #tpu.dimension_semantics<parallel>], iteration_bounds = array<i64: 2, 1, 1>, scalar_prefetch = 0 : i64, scratch_operands = 0 : i64, tpu.core_type = #tpu.core_type<tc>, window_params = [{transform_indices = @transform_0, window_bounds = array<i64: 1, 4, 256>}, {transform_indices = @transform_1, window_bounds = array<i64: 1, 1, 256>}, {transform_indices = @transform_2, window_bounds = array<i64: 1, 4, 1>}, {transform_indices = @transform_3, window_bounds = array<i64: 1, 4, 256>}]} {
    %c0 = arith.constant 0 : index
    %c0_0 = arith.constant 0 : index
    %c0_1 = arith.constant 0 : index
    %0 = vector.load %arg3[%c0, %c0_0, %c0_1] : memref<1x4x256xf32, #tpu.memory_space<vmem>>, vector<1x4x256xf32>
    %c0_2 = arith.constant 0 : index
    %c0_3 = arith.constant 0 : index
    %c0_4 = arith.constant 0 : index
    %1 = vector.load %arg4[%c0_2, %c0_3, %c0_4] : memref<1x1x256xf32, #tpu.memory_space<vmem>>, vector<1x1x256xf32>
    %c0_5 = arith.constant 0 : index
    %c0_6 = arith.constant 0 : index
    %c0_7 = arith.constant 0 : index
    %2 = vector.load %arg5[%c0_5, %c0_6, %c0_7] : memref<1x4x1xf32, #tpu.memory_space<vmem>>, vector<1x4x1xf32>
    %3 = vector.broadcast %1 : vector<1x1x256xf32> to vector<1x4x256xf32>
    %4 = vector.broadcast %2 : vector<1x4x1xf32> to vector<1x4x256xf32>
    %5 = arith.mulf %3, %4 : vector<1x4x256xf32>
    %6 = arith.addf %0, %5 : vector<1x4x256xf32>
    %c0_8 = arith.constant 0 : index
    %c0_9 = arith.constant 0 : index
    %c0_10 = arith.constant 0 : index
    %7 = vector.load %arg6[%c0_8, %c0_9, %c0_10] : memref<1x4x256xf32, #tpu.memory_space<vmem>>, vector<1x4x256xf32>
    tpu.vector_store %arg6[%c0_8, %c0_9, %c0_10], %6 {strides = array<i32>} : memref<1x4x256xf32, #tpu.memory_space<vmem>>, vector<1x4x256xf32>,
    return
  }
  func.func @transform_0(%arg0: i32, %arg1: i32, %arg2: i32) -> (i32, i32, i32) {
    %c0_i32 = arith.constant 0 : i32
    return %arg0, %arg1, %arg2 : i32, i32, i32
  }
  func.func @transform_1(%arg0: i32, %arg1: i32, %arg2: i32) -> (i32, i32, i32) {
    %c0_i32 = arith.constant 0 : i32
    %c0_i32_0 = arith.constant 0 : i32
    return %arg0, %c0_i32, %arg2 : i32, i32, i32
  }
  func.func @transform_2(%arg0: i32, %arg1: i32, %arg2: i32) -> (i32, i32, i32) {
    %c0_i32 = arith.constant 0 : i32
    %c0_i32_0 = arith.constant 0 : i32
    %c0_i32_1 = arith.constant 0 : i32
    return %c0_i32, %arg1, %c0_i32_0 : i32, i32, i32
  }
  func.func @transform_3(%arg0: i32, %arg1: i32, %arg2: i32) -> (i32, i32, i32) {
    %c0_i32 = arith.constant 0 : i32
    return %arg0, %arg1, %arg2 : i32, i32, i32
  }
}

</mosaic_0001>

<llo_original>
// kernel: tpu_custom_call.1
$region0: #{tpu_custom_call.1}
  #allocation0 [shape = 'u32[]', space=smem, size = 0x4, offset = 0x4, fixed_abs, tag = 'smem constant byte address 0x4 - core index']
  #allocation1 [shape = 'u32[72,128]{1,0:T(1,128)}', space=vmem, size = 0x9000, scoped, tag = 'internal scratch']
  %s0 = inlined_call_operand.hbm [shape: f32[2,4,256], index: 0, kind: input, shape index: {}]
  %s1 = inlined_call_operand.vmem [shape: f32[2,1,256], index: 1, kind: input, shape index: {}]
  %s2 = inlined_call_operand.vmem [shape: f32[1,4,1], index: 2, kind: input, shape index: {}]
  %s3 = inlined_call_operand.hbm [shape: f32[2,4,256], index: 3, kind: output, shape index: {}]
  %s4 = sld [smem:[#allocation0]]
  $region49: #{tpu_custom_call.1} parent=0
    _
  %s6 = ssub.s32 1, %s4
  %s7 = scalar_select 0, %s6, %s4
  $region1: #{tpu_custom_call.1} parent=0
    #allocation2 [shape = 'u8[8192]{0}', space=vmem, size = 0x2000, scoped, tag = 'input window, operand 0']
    #allocation3 [shape = 's32[2]{0}', space=sflag, size = 0x8, scoped, tag = 'scoped memory for tpu_custom_call.1']
    #allocation4 [shape = 's32[2]{0}', space=sflag, size = 0x8, scoped, tag = 'scoped memory for tpu_custom_call.1']
    #allocation5 [shape = 'u8[8192]{0}', space=vmem, size = 0x2000, scoped, tag = 'output window, operand 0']
    %8 = vsyncpa [#allocation3], 0
    %s9 = scalar_lea.sflag [#allocation3], 1
    %10 = vsyncpa %s9, 0
    %11 = vsyncpa [#allocation4], 0
    %s12 = scalar_lea.sflag [#allocation4], 1
    %13 = vsyncpa %s12, 0
    loop: start=0, step=1, limit=4
    $region2: #{tpu_custom_call.1} parent=1 // loop_pre_header
      _
    $region3: #{tpu_custom_call.1} parent=1 // loop_header
      %s15 = sphi 0, %s19
      %p16 = scmp.ge.s32.totalorder %s15, 4
      %s22 = sphi 0, %s41
      %s23 = sphi 0, %s37
      %s24 = sphi 0, %s33
      %s25 = sphi 0, %s22
      %s26 = sphi 0, %s23
      %s27 = sphi 0, %s24
      %s28 = sphi 0, %s25
      %s29 = sphi 0, %s26
      %s30 = sphi 0, %s27
      %s48 = sphi 0, %s50
      %s51 = sphi 0, %s48
      %s52 = sphi 0, %s51
      %s68 = sphi 0, %s52
      %s76 = sphi 0, %s78
      %s79 = sphi 0, %s76
      %s80 = sphi 0, %s79
      %s96 = sphi 0, %s80
      %s102 = sphi 0, %s104
      %s105 = sphi 0, %s102
      %s106 = sphi 0, %s105
      %s122 = sphi 0, %s106
      %s132 = sphi 0, %s134
      %s135 = sphi 0, %s132
      %s136 = sphi 0, %s135
      %s152 = sphi 0, %s136
    $region4: #{tpu_custom_call.1} parent=1 // loop_header_branch
      %18 = sbr.rel (%p16) target = $region8
    $region5: #{tpu_custom_call.1} parent=1 // loop_body
      %s20 = ssub.s32 %s15, 1
      %s21 = ssub.s32 %s15, 2
      %s31 = sadd.s32 1, %s24
      %p32 = scmp.ge.s32.totalorder %s31, 1
      %s33 = scalar_select %p32, 0, %s31
      %s34 = sadd.s32 1, %s23
      %s35 = scalar_select %p32, %s34, %s23
      %p36 = scmp.ge.s32.totalorder %s35, 1
      %s37 = scalar_select %p36, 0, %s35
      %s38 = sadd.s32 1, %s22
      %s39 = scalar_select %p36, %s38, %s22
      %p40 = scmp.ge.s32.totalorder %s39, 2
      %s41 = scalar_select %p40, 0, %s39
      %s42 = ssub.s32 %s22, %s41
      %s43 = ssub.s32 %s23, %s37
      %s44 = sor.u32 %s42, %s43
      %s45 = ssub.s32 %s24, %s33
      %s46 = sor.u32 %s44, %s45
      %p47 = scmp.eq.s32.totalorder %s46, 0
      %s49 = sadd.s32 %s48, 1
      %s50 = scalar_select %p47, %s48, %s49
      %p53 = pneg %p47
      %p54 = scmp.eq.s32.totalorder %s15, 1
      %p55 = por %p53, %p54
      %p56 = scmp.ne.s32.totalorder %s48, %s51
      %p57 = scmp.eq.s32.totalorder %s15, 0
      %p58 = por %p56, %p57
      %p59 = scmp.ne.s32.totalorder %s48, %s51
      %p60 = scmp.eq.s32.totalorder %s20, 1
      %p61 = por %p59, %p60
      %p62 = scmp.ne.s32.totalorder %s51, %s52
      %p63 = scmp.eq.s32.totalorder %s20, 0
      %p64 = por %p62, %p63
      %p65 = scmp.ne.s32.totalorder %s51, %s52
      %p66 = scmp.eq.s32.totalorder %s21, 1
      %p67 = por %p65, %p66
      %p69 = scmp.ne.s32.totalorder %s52, %s68
      %p70 = scmp.eq.s32.totalorder %s21, 0
      %p71 = por %p69, %p70
      %s72 = ssub.s32 %s22, %s41
      %s73 = ssub.s32 %s24, %s33
      %s74 = sor.u32 %s72, %s73
      %p75 = scmp.eq.s32.totalorder %s74, 0
      %s77 = sadd.s32 %s76, 1
      %s78 = scalar_select %p75, %s76, %s77
      %p81 = pneg %p75
      %p82 = scmp.eq.s32.totalorder %s15, 1
      %p83 = por %p81, %p82
      %p84 = scmp.ne.s32.totalorder %s76, %s79
      %p85 = scmp.eq.s32.totalorder %s15, 0
      %p86 = por %p84, %p85
      %p87 = scmp.ne.s32.totalorder %s76, %s79
      %p88 = scmp.eq.s32.totalorder %s20, 1
      %p89 = por %p87, %p88
      %p90 = scmp.ne.s32.totalorder %s79, %s80
      %p91 = scmp.eq.s32.totalorder %s20, 0
      %p92 = por %p90, %p91
      %p93 = scmp.ne.s32.totalorder %s79, %s80
      %p94 = scmp.eq.s32.totalorder %s21, 1
      %p95 = por %p93, %p94
      %p97 = scmp.ne.s32.totalorder %s80, %s96
      %p98 = scmp.eq.s32.totalorder %s21, 0
      %p99 = por %p97, %p98
      %s100 = ssub.s32 %s23, %s37
      %p101 = scmp.eq.s32.totalorder %s100, 0
      %s103 = sadd.s32 %s102, 1
      %s104 = scalar_select %p101, %s102, %s103
      %p107 = pneg %p101
      %p108 = scmp.eq.s32.totalorder %s15, 1
      %p109 = por %p107, %p108
      %p110 = scmp.ne.s32.totalorder %s102, %s105
      %p111 = scmp.eq.s32.totalorder %s15, 0
      %p112 = por %p110, %p111
      %p113 = scmp.ne.s32.totalorder %s102, %s105
      %p114 = scmp.eq.s32.totalorder %s20, 1
      %p115 = por %p113, %p114
      %p116 = scmp.ne.s32.totalorder %s105, %s106
      %p117 = scmp.eq.s32.totalorder %s20, 0
      %p118 = por %p116, %p117
      %p119 = scmp.ne.s32.totalorder %s105, %s106
      %p120 = scmp.eq.s32.totalorder %s21, 1
      %p121 = por %p119, %p120
      %p123 = scmp.ne.s32.totalorder %s106, %s122
      %p124 = scmp.eq.s32.totalorder %s21, 0
      %p125 = por %p123, %p124
      %s126 = ssub.s32 %s22, %s41
      %s127 = ssub.s32 %s23, %s37
      %s128 = sor.u32 %s126, %s127
      %s129 = ssub.s32 %s24, %s33
      %s130 = sor.u32 %s128, %s129
      %p131 = scmp.eq.s32.totalorder %s130, 0
      %s133 = sadd.s32 %s132, 1
      %s134 = scalar_select %p131, %s132, %s133
      %p137 = pneg %p131
      %p138 = scmp.eq.s32.totalorder %s15, 1
      %p139 = por %p137, %p138
      %p140 = scmp.ne.s32.totalorder %s132, %s135
      %p141 = scmp.eq.s32.totalorder %s15, 0
      %p142 = por %p140, %p141
      %p143 = scmp.ne.s32.totalorder %s132, %s135
      %p144 = scmp.eq.s32.totalorder %s20, 1
      %p145 = por %p143, %p144
      %p146 = scmp.ne.s32.totalorder %s135, %s136
      %p147 = scmp.eq.s32.totalorder %s20, 0
      %p148 = por %p146, %p147
      %p149 = scmp.ne.s32.totalorder %s135, %s136
      %p150 = scmp.eq.s32.totalorder %s21, 1
      %p151 = por %p149, %p150
      %p153 = scmp.ne.s32.totalorder %s136, %s152
      %p154 = scmp.eq.s32.totalorder %s21, 0
      %p155 = por %p153, %p154
      %p156 = scmp.le.s32.totalorder 1, %s15
      %p157 = scmp.lt.s32.totalorder %s15, 3
      %p158 = pnand %p156, %p157
      %p159 = pneg %p158
      // Predicated region
      $region9: #{tpu_custom_call.1} parent=5 // pred_check
        _
      $region10: #{tpu_custom_call.1} parent=5 // pred_check_branch
        %161 = sbr.rel (%p158) target = $region12
      $region11: #{tpu_custom_call.1} parent=5 // pred_region
        %s162 = ssub.s32 %s15, 1
        // Predicated region
        $region13: #{tpu_custom_call.1} parent=11 // pred_check
          %p163 = pneg %p118
        $region14: #{tpu_custom_call.1} parent=11 // pred_check_branch
          %165 = sbr.rel (%p163) target = $region16
        $region15: #{tpu_custom_call.1} parent=11 // pred_region
          %p166 = scmp.lt.s32.totalorder %s26, 0
          %s167 = scalar_select %p166, %s26, 0
          %s168 = smul.addr %s167, 4
          %s169 = scalar_lea.vmem %s2, %s168
        $region16: #{tpu_custom_call.1} parent=11 // pred_fallthru
          _
      $region12: #{tpu_custom_call.1} parent=5 // pred_fallthru
        _
      %p170 = scmp.lt.s32.totalorder %s15, 2
      // Predicated region
      $region17: #{tpu_custom_call.1} parent=5 // pred_check
        %p171 = pneg %p170
      $region18: #{tpu_custom_call.1} parent=5 // pred_check_branch
        %173 = sbr.rel (%p171) target = $region20
      $region19: #{tpu_custom_call.1} parent=5 // pred_region
        // Predicated region
        $region21: #{tpu_custom_call.1} parent=19 // pred_check
          %p174 = pneg %p58
        $region22: #{tpu_custom_call.1} parent=19 // pred_check_branch
          %176 = sbr.rel (%p174) target = $region24
        $region23: #{tpu_custom_call.1} parent=19 // pred_region
          %s177 = sand.u32 %s48, 1
          %s178 = scalar_lea.sflag [#allocation3], %s177
          %s179 = sand.u32 %s48, 1
          %s180 = smul.addr %s179, 8
          %s181 = scalar_lea.vmem [#allocation2], %s180
          %s182 = smul.u32 2, %s24
          %184 = vsyncadd %s178, 0
          %s185 = smul.addr %s23, 2
          %s186 = sadd.s32 %s182, %s185
          %s187 = smul.addr %s22, 2
          %s188 = sadd.s32 %s186, %s187
          %s189 = smul.addr %s188, 4
          %s190 = scalar_lea.hbm %s0, %s189
          %s192 = sshll.u32 %s190, 4
          %s193 = int_to_ptr.hbm [resolvable:$true] %s192
          %s194 = sshll.u32 %s181, 4
          %s195 = int_to_ptr.vmem [resolvable:$true] %s194
          %197 = dma.hbm_to_vmem [thread:$0]  %s193, 128, %s195, %s178
        $region24: #{tpu_custom_call.1} parent=19 // pred_fallthru
          _
        // Predicated region
        $region25: #{tpu_custom_call.1} parent=19 // pred_check
          %p198 = pneg %p86
        $region26: #{tpu_custom_call.1} parent=19 // pred_check_branch
          %200 = sbr.rel (%p198) target = $region28
        $region27: #{tpu_custom_call.1} parent=19 // pred_region
          %s201 = smul.u32 2, %s24
          %p202 = scmp.lt.s32.totalorder %s22, 1
          %s203 = scalar_select %p202, %s22, 1
          %p204 = scmp.lt.s32.totalorder %s201, 1
          %s205 = scalar_select %p204, %s201, 1
          %s206 = smul.addr %s203, 2
          %s207 = sadd.s32 %s205, %s206
          %s208 = scalar_lea.vmem %s1, %s207
          %s209 = smul.u32 2, %s24
        $region28: #{tpu_custom_call.1} parent=19 // pred_fallthru
          _
      $region20: #{tpu_custom_call.1} parent=5 // pred_fallthru
        _
      %p210 = scmp.le.s32.totalorder 1, %s15
      %p211 = scmp.lt.s32.totalorder %s15, 3
      %p212 = pnand %p210, %p211
      %p213 = pneg %p212
      // Predicated region
      $region29: #{tpu_custom_call.1} parent=5 // pred_check
        _
      $region30: #{tpu_custom_call.1} parent=5 // pred_check_branch
        %215 = sbr.rel (%p212) target = $region32
      $region31: #{tpu_custom_call.1} parent=5 // pred_region
        %s216 = ssub.s32 %s15, 1
        %s217 = sand.u32 %s51, 1
        %s218 = scalar_lea.sflag [#allocation3], %s217
        %s219 = sand.u32 %s51, 1
        %s220 = smul.addr %s219, 8
        %s221 = scalar_lea.vmem [#allocation2], %s220
        // Predicated region
        $region33: #{tpu_custom_call.1} parent=31 // pred_check
          %p222 = pneg %p64
        $region34: #{tpu_custom_call.1} parent=31 // pred_check_branch
          %224 = sbr.rel (%p222) target = $region36
        $region35: #{tpu_custom_call.1} parent=31 // pred_region
          %226 = dma.done %s218, 128
        $region36: #{tpu_custom_call.1} parent=31 // pred_fallthru
          _
        %s227 = sand.u32 %s51, 1
        %s228 = scalar_lea.sflag [#allocation3], %s227
        %s229 = sand.u32 %s51, 1
        %s230 = smul.addr %s229, 8
        %s231 = scalar_lea.vmem [#allocation2], %s230
        %p232 = pneg %p64
        %p233 = pneg %p61
        %s234 = smul.u32 2, %s27
        %p235 = scmp.lt.s32.totalorder %s25, 1
        %s236 = scalar_select %p235, %s25, 1
        %p237 = scmp.lt.s32.totalorder %s234, 1
        %s238 = scalar_select %p237, %s234, 1
        %s239 = smul.addr %s236, 2
        %s240 = sadd.s32 %s238, %s239
        %s241 = scalar_lea.vmem %s1, %s240
        %p242 = pneg %p92
        %p243 = pneg %p89
        %p244 = scmp.lt.s32.totalorder %s26, 0
        %s245 = scalar_select %p244, %s26, 0
        %s246 = smul.addr %s245, 4
        %s247 = scalar_lea.vmem %s2, %s246
        %p248 = pneg %p118
        %p249 = pneg %p115
        %p250 = pneg %p148
        %p251 = pneg %p145
        %s252 = sand.u32 %s135, 1
        %s253 = scalar_lea.sflag [#allocation4], %s252
        %s254 = sand.u32 %s135, 1
        %s255 = smul.addr %s254, 8
        %s256 = scalar_lea.vmem [#allocation5], %s255
        %s257 = smul.u32 2, %s27
        %s258 = smul.u32 2, %s27
        %p259 = scmp.lt.s32.totalorder %s25, 1
        %s260 = scalar_select %p259, %s25, 1
        %p261 = scmp.lt.s32.totalorder %s258, 1
        %s262 = scalar_select %p261, %s258, 1
        %s263 = smul.addr %s260, 2
        %s264 = sadd.s32 %s262, %s263
        %s265 = scalar_lea.vmem %s1, %s264
        %s266 = smul.u32 2, %s27
        %p267 = scmp.lt.s32.totalorder %s26, 0
        %s268 = scalar_select %p267, %s26, 0
        %s269 = smul.addr %s268, 4
        %s270 = scalar_lea.vmem %s2, %s269
        %s271 = smul.u32 2, %s27
        %v272 = vld [vmem:[%s221] sm:$0xff]
        %v273 = vld [vmem:[%s265] sm:$0x3]
        %v274 = vld [vmem:[%s270] sm:$0xf]
        %v276 = vperm.slane %v273, 0
        %v277 = vperm.slane %v273, 1
        %281 = vset.pattern.permute.xlu0 0
        %282 = vperm.xlu0 %281, %v274
        %v283 = vpop.permute.xlu0 %282
        %v285 = vmul.f32 %v276, %v283
        %v286 = vmul.f32 %v277, %v283
        %v289 = vrot.slane %v286, 4
        %vm290 = vcmask 1043456
        %v291 = vsel %vm290, %v285, %v289
        %v293 = vadd.f32 %v272, %v291
        %294 = vst [vmem:[%s256] sm:$0xff] %v293
        %s295 = sand.u32 %s135, 1
        %s296 = scalar_lea.sflag [#allocation4], %s295
        %s297 = sand.u32 %s135, 1
        %s298 = smul.addr %s297, 8
        %s299 = scalar_lea.vmem [#allocation5], %s298
        // Predicated region
        $region37: #{tpu_custom_call.1} parent=31 // pred_check
          %p300 = pneg %p145
        $region38: #{tpu_custom_call.1} parent=31 // pred_check_branch
          %302 = sbr.rel (%p300) target = $region40
        $region39: #{tpu_custom_call.1} parent=31 // pred_region
          %s303 = smul.u32 2, %s27
          %305 = vsyncadd %s296, 0
          %s306 = smul.addr %s26, 2
          %s307 = sadd.s32 %s303, %s306
          %s308 = smul.addr %s25, 2
          %s309 = sadd.s32 %s307, %s308
          %s310 = smul.addr %s309, 4
          %s311 = scalar_lea.hbm %s3, %s310
          %s313 = sshll.u32 %s299, 4
          %s314 = int_to_ptr.vmem [resolvable:$true] %s313
          %s315 = sshll.u32 %s311, 4
          %s316 = int_to_ptr.hbm [resolvable:$true] %s315
          %318 = dma.vmem_to_hbm [thread:$0]  %s314, 128, %s316, %s296
        $region40: #{tpu_custom_call.1} parent=31 // pred_fallthru
          _
      $region32: #{tpu_custom_call.1} parent=5 // pred_fallthru
        _
      %p319 = scmp.le.s32.totalorder 2, %s15
      // Predicated region
      $region41: #{tpu_custom_call.1} parent=5 // pred_check
        %p320 = pneg %p319
      $region42: #{tpu_custom_call.1} parent=5 // pred_check_branch
        %322 = sbr.rel (%p320) target = $region44
      $region43: #{tpu_custom_call.1} parent=5 // pred_region
        %s323 = ssub.s32 %s15, 2
        // Predicated region
        $region45: #{tpu_custom_call.1} parent=43 // pred_check
          %p324 = pneg %p151
        $region46: #{tpu_custom_call.1} parent=43 // pred_check_branch
          %326 = sbr.rel (%p324) target = $region48
        $region47: #{tpu_custom_call.1} parent=43 // pred_region
          %s327 = sand.u32 %s136, 1
          %s328 = scalar_lea.sflag [#allocation4], %s327
          %s329 = sand.u32 %s136, 1
          %s330 = smul.addr %s329, 8
          %s331 = scalar_lea.vmem [#allocation5], %s330
          %333 = dma.done %s328, 128
        $region48: #{tpu_custom_call.1} parent=43 // pred_fallthru
          _
      $region44: #{tpu_custom_call.1} parent=5 // pred_fallthru
        _
    $region6: #{tpu_custom_call.1} parent=1 // loop_footer
      %s19 = sadd.s32 1, %s15
    $region7: #{tpu_custom_call.1} parent=1 // loop_footer_branch
      %14 = sbr.rel target = $region3
    $region8: #{tpu_custom_call.1} parent=1 // loop_exit
      _
    %334 = vsyncpa [#allocation3], 1
    %s335 = scalar_lea.sflag [#allocation3], 1
    %336 = vsyncpa %s335, 1
    %337 = vsyncpa [#allocation4], 1
    %s338 = scalar_lea.sflag [#allocation4], 1
    %339 = vsyncpa %s338, 1

</llo_original>
